<compile_context>
chip_gen: v6e
topology: v6e:2x2x1
jax: 0.10.0
libtpu: 0.0.40
codegen_flags: <defaults>
</compile_context>

<pallas_src>
import jax
import jax.numpy as jnp
from jax.experimental import pallas as pl
from jax.experimental.pallas import tpu as pltpu


LANE = 128  # pad contraction/feature dims to the TPU lane width


def _round_up(n, m=LANE):
    return ((n + m - 1) // m) * m


def _vmem_full(shape):
    """Whole-array block (arrays here are tiny -> fully resident in VMEM)."""
    return pl.BlockSpec(shape, lambda *_: (0,) * len(shape))


# ---------------------------------------------------------------------------
# Fused kernel: backbone patch-embed -> ca_head -> {c_head, p_head}
# ---------------------------------------------------------------------------
def _multicrop_kernel(patches_ref, cls_ref, w_pe_ref, w_ca_ref, w_c_ref, w_p_ref,
                      c_ref, p_ref):
    bf16, f32 = jnp.bfloat16, jnp.float32
    m = patches_ref.shape[0]        # B * n_tok (static)
    batch = c_ref.shape[0]

    # Stage 1 — backbone patch embedding. bf16 cast fused in-kernel (patches
    # arrive f32 straight from HBM); MXU matmul with f32 accumulation.
    # Biases are all-zero in this stand-in and are deleted (fold nonzero biases
    # via a constant-1 contraction row if real modules need them).
    tok = jnp.dot(patches_ref[...].astype(bf16), w_pe_ref[...],
                  preferred_element_type=f32)                       # (m, dp) f32

    # Stage 2 — ca_head: ONE matmul over [patch tokens ; CLS row].  The CLS row
    # is appended LAST so both row slices below start at sublane-aligned
    # offsets (m is a multiple of 8/16 here).
    stacked = jnp.concatenate([tok.astype(bf16), cls_ref[...]], axis=0)   # (m+1, dp)
    logits = jnp.dot(stacked, w_ca_ref[...], preferred_element_type=f32)  # (m+1, dp)

    # Stage 3 — heads.  c_head runs on the single CLS row (batch-invariant in
    # this stand-in) and is broadcast to B rows only at writeback; p_head runs
    # on the m patch rows.  Head weights are already logical-width (32), so the
    # stores ARE the final outputs — no post-kernel slicing.
    logits_bf = logits.astype(bf16)
    c_row = jnp.dot(logits_bf[m:, :], w_c_ref[...], preferred_element_type=f32)  # (1, out)
    p_out = jnp.dot(logits_bf[:m, :], w_p_ref[...], preferred_element_type=f32)  # (m, out)

    c_ref[...] = jnp.broadcast_to(c_row, (batch, c_ref.shape[1]))
    p_ref[...] = p_out


def multicrop_fused(patches, cls_tok, w_pe, w_ca, w_c, w_p, *, batch):
    """patches: (B*n_tok, patch_dim) f32; weights lane-padded bf16 (built once)."""
    m, k = patches.shape
    dp = w_ca.shape[1]
    out = w_c.shape[1]

    # Advisory cost hint so XLA can schedule surrounding ops around the call.
    flops = 2 * (m * k * dp + (m + 1) * dp * dp + (m + 1) * dp * out)
    bytes_accessed = (patches.size * 4 + cls_tok.size * 2
                      + (w_pe.size + w_ca.size + w_c.size + w_p.size) * 2
                      + (batch + m) * out * 4)

    operands = (patches, cls_tok, w_pe, w_ca, w_c, w_p)
    return pl.pallas_call(
        _multicrop_kernel,
        out_shape=(jax.ShapeDtypeStruct((batch, out), jnp.float32),
                   jax.ShapeDtypeStruct((m, out), jnp.float32)),
        grid=(1,),
        # Full-array blocks: everything (~150 KiB total) lives in VMEM for the
        # single grid step; block_shape == array shape is exempt from the
        # (8,128) divisibility rule.
        in_specs=[_vmem_full(o.shape) for o in operands],
        out_specs=(_vmem_full((batch, out)), _vmem_full((m, out))),
        compiler_params=pltpu.CompilerParams(
            dimension_semantics=("arbitrary",)),
        cost_estimate=pl.CostEstimate(flops=int(flops), transcendentals=0,
                                      bytes_accessed=int(bytes_accessed)),
    )(*operands)


# ---------------------------------------------------------------------------
# MultiCropWrapper with synthetic deterministic sub-modules
# ---------------------------------------------------------------------------
class MultiCropWrapper:
    def __init__(self, key, in_chans=4, patch_size=4, embed_dim=32, out_dim=32):
        self.patch_size = patch_size
        self.embed_dim = embed_dim
        self.out_dim = out_dim
        patch_dim = in_chans * patch_size * patch_size
        dp = _round_up(embed_dim)   # lane-padded embed dim (128)

        keys = jax.random.split(key, 5)
        s = 0.1
        # Logical (unpadded, f32) parameters — also used by the pure-JAX
        # reference.  backbone.fc / backbone.head are Identity, as in the
        # PyTorch __init__.
        # TODO(synk): the full ViT backbone (pos-embed + transformer blocks)
        # and the real cross-attention ca_head are injected modules not defined
        # in the spec; they are stood in by deterministic linear stages.
        self._w_patch = s * jax.random.normal(keys[0], (patch_dim, embed_dim), jnp.float32)
        self._cls     = s * jax.random.normal(keys[1], (1, embed_dim), jnp.float32)
        self._w_ca    = s * jax.random.normal(keys[2], (embed_dim, embed_dim), jnp.float32)
        self._w_c     = s * jax.random.normal(keys[3], (embed_dim, out_dim), jnp.float32)
        self._w_p     = s * jax.random.normal(keys[4], (embed_dim, out_dim), jnp.float32)
        self._b_patch = jnp.zeros((embed_dim,), jnp.float32)
        self._b_ca    = jnp.zeros((embed_dim,), jnp.float32)
        self._b_c     = jnp.zeros((out_dim,), jnp.float32)
        self._b_p     = jnp.zeros((out_dim,), jnp.float32)

        # Kernel-side parameters: contraction dims zero-padded to the lane
        # width (128) and cast to bf16 ONCE here (hoisted out of the hot path).
        # Zero rows/cols contribute nothing, so the result stays exact.
        # Head weights keep the logical 32-wide output so the kernel writes the
        # final logical values directly (no post-kernel slicing).
        def pad2(w, rows, cols):
            return jnp.pad(w, ((0, rows - w.shape[0]), (0, cols - w.shape[1])))

        self.w_pe = pad2(self._w_patch, patch_dim, dp).astype(jnp.bfloat16)
        self.cls  = pad2(self._cls, 1, dp).astype(jnp.bfloat16)
        self.w_ca = pad2(self._w_ca, dp, dp).astype(jnp.bfloat16)
        self.w_c  = pad2(self._w_c, dp, out_dim).astype(jnp.bfloat16)
        self.w_p  = pad2(self._w_p, dp, out_dim).astype(jnp.bfloat16)

        # One jit for the whole forward: unfold + kernel + output reshapes fuse
        # into a single dispatch (the kernel itself is overhead-bound at M=32).
        self._forward_jit = jax.jit(self._forward)

    def _patches(self, x):
        B, C, H, W = x.shape
        P = self.patch_size
        nh, nw = H // P, W // P
        # Stride-P "conv" unfold: NCHW -> (B*nh*nw, C*P*P); stays f32 — the
        # bf16 cast happens inside the kernel (one fewer HBM round-trip).
        # TODO(synk): for large images move this gather into the kernel via a
        # grid/index_map patch gather on the NCHW input instead of this
        # host-side transpose.
        return (x.reshape(B, C, nh, P, nw, P)
                 .transpose(0, 2, 4, 1, 3, 5)
                 .reshape(B * nh * nw, C * P * P))

    def _forward(self, x):
        B = x.shape[0]
        n_tok = (x.shape[2] // self.patch_size) * (x.shape[3] // self.patch_size)
        patches = self._patches(x)
        c2d, p2d = multicrop_fused(
            patches, self.cls, self.w_pe, self.w_ca, self.w_c, self.w_p, batch=B)
        # Contiguity-preserving reshapes only (no slices) — effectively free.
        o = self.out_dim
        return [c2d.reshape(B, 1, o), p2d.reshape(B, n_tok, o)]

    def __call__(self, x, head_only=False, loc=True):
        # TODO(synk): `head_only` / `loc` are pass-through knobs of the injected
        # sub-modules; the synthetic heads have no branch on them.
        return self._forward_jit(x)

    # Pure-JAX f32 reference of the same staged forward (correctness check).
    def reference(self, x):
        B = x.shape[0]
        n_tok = (x.shape[2] // self.patch_size) * (x.shape[3] // self.patch_size)
        with jax.default_matmul_precision("highest"):
            patches = self._patches(x)
            tok = (patches @ self._w_patch + self._b_patch).reshape(B, n_tok, -1)
            cls = jnp.broadcast_to(self._cls[None], (B, 1, self.embed_dim))
            output = jnp.concatenate([cls, tok], axis=1)      # backbone(x)
            logits = output @ self._w_ca + self._b_ca         # ca_head(output, loc)
            c = logits[:, :1] @ self._w_c + self._b_c         # c_head(logits[:, :1])
            p = logits[:, 1:] @ self._w_p + self._b_p         # p_head(logits[:, 1:])
        return [c, p]


if __name__ == "__main__":
    key = jax.random.PRNGKey(0)
    k_param, k_data = jax.random.split(key)

    model = MultiCropWrapper(k_param, in_chans=4, patch_size=4,
                             embed_dim=32, out_dim=32)

    # small NCHW input consistent with the module's conv-style backbone
    x = jax.random.normal(k_data, (2, 4, 16, 16), jnp.float32)

    c_out, p_out = model(x)
    jax.block_until_ready(c_out)
    jax.block_until_ready(p_out)

    assert c_out.shape == (2, 1, 32), c_out.shape
    assert p_out.shape == (2, 16, 32), p_out.shape

    # Validate fused bf16 kernel against the staged f32 reference.
    c_ref, p_ref = model.reference(x)
    assert jnp.allclose(c_out, c_ref, rtol=5e-2, atol=3e-2), \
        float(jnp.max(jnp.abs(c_out - c_ref)))
    assert jnp.allclose(p_out, p_ref, rtol=5e-2, atol=3e-2), \
        float(jnp.max(jnp.abs(p_out - p_ref)))

    print("KERNEL_OK")
</pallas_src>

<mosaic_0001>
module attributes {stable_mosaic.version = 11 : i64} {
  func.func @_multicrop_kernel(%arg0: i32, %arg1: memref<32x64xf32, #tpu.memory_space<vmem>>, %arg2: memref<1x128xbf16, #tpu.memory_space<vmem>>, %arg3: memref<64x128xbf16, #tpu.memory_space<vmem>>, %arg4: memref<128x128xbf16, #tpu.memory_space<vmem>>, %arg5: memref<128x32xbf16, #tpu.memory_space<vmem>>, %arg6: memref<128x32xbf16, #tpu.memory_space<vmem>>, %arg7: memref<2x32xf32, #tpu.memory_space<vmem>>, %arg8: memref<32x32xf32, #tpu.memory_space<vmem>>) attributes {dimension_semantics = [#tpu.dimension_semantics<arbitrary>], iteration_bounds = array<i64: 1>, scalar_prefetch = 0 : i64, scratch_operands = 0 : i64, tpu.core_type = #tpu.core_type<tc>, window_params = [{pipeline_mode = #tpu.pipeline_mode<synchronous>, transform_indices = @transform_0, window_bounds = array<i64: 32, 64>}, {pipeline_mode = #tpu.pipeline_mode<synchronous>, transform_indices = @transform_1, window_bounds = array<i64: 1, 128>}, {pipeline_mode = #tpu.pipeline_mode<synchronous>, transform_indices = @transform_2, window_bounds = array<i64: 64, 128>}, {pipeline_mode = #tpu.pipeline_mode<synchronous>, transform_indices = @transform_3, window_bounds = array<i64: 128, 128>}, {pipeline_mode = #tpu.pipeline_mode<synchronous>, transform_indices = @transform_4, window_bounds = array<i64: 128, 32>}, {pipeline_mode = #tpu.pipeline_mode<synchronous>, transform_indices = @transform_5, window_bounds = array<i64: 128, 32>}, {pipeline_mode = #tpu.pipeline_mode<synchronous>, transform_indices = @transform_6, window_bounds = array<i64: 2, 32>}, {pipeline_mode = #tpu.pipeline_mode<synchronous>, transform_indices = @transform_7, window_bounds = array<i64: 32, 32>}]} {
    %c0 = arith.constant 0 : index
    %c0_0 = arith.constant 0 : index
    %0 = vector.load %arg1[%c0, %c0_0] : memref<32x64xf32, #tpu.memory_space<vmem>>, vector<32x64xf32>
    %1 = arith.truncf %0 : vector<32x64xf32> to vector<32x64xbf16>
    %c0_1 = arith.constant 0 : index
    %c0_2 = arith.constant 0 : index
    %2 = vector.load %arg3[%c0_1, %c0_2] : memref<64x128xbf16, #tpu.memory_space<vmem>>, vector<64x128xbf16>
    %cst = arith.constant dense<0.000000e+00> : vector<32x128xf32>
    %3 = tpu.matmul %1, %2, %cst {dimension_numbers = #tpu.dot_dimension_numbers<[1], [0], [0], [1], [0, 0, 1, 1], [], []>} : vector<32x64xbf16>, vector<64x128xbf16>, vector<32x128xf32> -> vector<32x128xf32>
    %4 = arith.truncf %3 : vector<32x128xf32> to vector<32x128xbf16>
    %c0_3 = arith.constant 0 : index
    %c0_4 = arith.constant 0 : index
    %5 = vector.load %arg2[%c0_3, %c0_4] : memref<1x128xbf16, #tpu.memory_space<vmem>>, vector<1x128xbf16>
    %6 = tpu.concatenate %4, %5 in 0 : vector<32x128xbf16>, vector<1x128xbf16> -> vector<33x128xbf16>
    %c0_5 = arith.constant 0 : index
    %c0_6 = arith.constant 0 : index
    %7 = vector.load %arg4[%c0_5, %c0_6] : memref<128x128xbf16, #tpu.memory_space<vmem>>, vector<128x128xbf16>
    %cst_7 = arith.constant dense<0.000000e+00> : vector<33x128xf32>
    %8 = tpu.matmul %6, %7, %cst_7 {dimension_numbers = #tpu.dot_dimension_numbers<[1], [0], [0], [1], [0, 0, 1, 1], [], []>} : vector<33x128xbf16>, vector<128x128xbf16>, vector<33x128xf32> -> vector<33x128xf32>
    %9 = arith.truncf %8 : vector<33x128xf32> to vector<33x128xbf16>
    %10 = vector.extract_strided_slice %9 {offsets = [32, 0], sizes = [1, 128], strides = [1, 1]} : vector<33x128xbf16> to vector<1x128xbf16>
    %c0_8 = arith.constant 0 : index
    %c0_9 = arith.constant 0 : index
    %11 = vector.load %arg5[%c0_8, %c0_9] : memref<128x32xbf16, #tpu.memory_space<vmem>>, vector<128x32xbf16>
    %cst_10 = arith.constant dense<0.000000e+00> : vector<1x32xf32>
    %12 = tpu.matmul %10, %11, %cst_10 {dimension_numbers = #tpu.dot_dimension_numbers<[1], [0], [0], [1], [0, 0, 1, 1], [], []>} : vector<1x128xbf16>, vector<128x32xbf16>, vector<1x32xf32> -> vector<1x32xf32>
    %13 = vector.extract_strided_slice %9 {offsets = [0, 0], sizes = [32, 128], strides = [1, 1]} : vector<33x128xbf16> to vector<32x128xbf16>
    %c0_11 = arith.constant 0 : index
    %c0_12 = arith.constant 0 : index
    %14 = vector.load %arg6[%c0_11, %c0_12] : memref<128x32xbf16, #tpu.memory_space<vmem>>, vector<128x32xbf16>
    %cst_13 = arith.constant dense<0.000000e+00> : vector<32x32xf32>
    %15 = tpu.matmul %13, %14, %cst_13 {dimension_numbers = #tpu.dot_dimension_numbers<[1], [0], [0], [1], [0, 0, 1, 1], [], []>} : vector<32x128xbf16>, vector<128x32xbf16>, vector<32x32xf32> -> vector<32x32xf32>
    %16 = vector.shape_cast %12 : vector<1x32xf32> to vector<1x32xf32>
    %17 = vector.broadcast %16 : vector<1x32xf32> to vector<2x32xf32>
    %c0_14 = arith.constant 0 : index
    %c0_15 = arith.constant 0 : index
    %18 = vector.load %arg7[%c0_14, %c0_15] : memref<2x32xf32, #tpu.memory_space<vmem>>, vector<2x32xf32>
    tpu.vector_store %arg7[%c0_14, %c0_15], %17 {strides = array<i32>} : memref<2x32xf32, #tpu.memory_space<vmem>>, vector<2x32xf32>,
    %c0_16 = arith.constant 0 : index
    %c0_17 = arith.constant 0 : index
    %19 = vector.load %arg8[%c0_16, %c0_17] : memref<32x32xf32, #tpu.memory_space<vmem>>, vector<32x32xf32>
    tpu.vector_store %arg8[%c0_16, %c0_17], %15 {strides = array<i32>} : memref<32x32xf32, #tpu.memory_space<vmem>>, vector<32x32xf32>,
    return
  }
  func.func @transform_0(%arg0: i32) -> (i32, i32) {
    %c0_i32 = arith.constant 0 : i32
    %c0_i32_0 = arith.constant 0 : i32
    %c0_i32_1 = arith.constant 0 : i32
    return %c0_i32, %c0_i32_0 : i32, i32
  }
  func.func @transform_1(%arg0: i32) -> (i32, i32) {
    %c0_i32 = arith.constant 0 : i32
    %c0_i32_0 = arith.constant 0 : i32
    %c0_i32_1 = arith.constant 0 : i32
    return %c0_i32, %c0_i32_0 : i32, i32
  }
  func.func @transform_2(%arg0: i32) -> (i32, i32) {
    %c0_i32 = arith.constant 0 : i32
    %c0_i32_0 = arith.constant 0 : i32
    %c0_i32_1 = arith.constant 0 : i32
    return %c0_i32, %c0_i32_0 : i32, i32
  }
  func.func @transform_3(%arg0: i32) -> (i32, i32) {
    %c0_i32 = arith.constant 0 : i32
    %c0_i32_0 = arith.constant 0 : i32
    %c0_i32_1 = arith.constant 0 : i32
    return %c0_i32, %c0_i32_0 : i32, i32
  }
  func.func @transform_4(%arg0: i32) -> (i32, i32) {
    %c0_i32 = arith.constant 0 : i32
    %c0_i32_0 = arith.constant 0 : i32
    %c0_i32_1 = arith.constant 0 : i32
    return %c0_i32, %c0_i32_0 : i32, i32
  }
  func.func @transform_5(%arg0: i32) -> (i32, i32) {
    %c0_i32 = arith.constant 0 : i32
    %c0_i32_0 = arith.constant 0 : i32
    %c0_i32_1 = arith.constant 0 : i32
    return %c0_i32, %c0_i32_0 : i32, i32
  }
  func.func @transform_6(%arg0: i32) -> (i32, i32) {
    %c0_i32 = arith.constant 0 : i32
    %c0_i32_0 = arith.constant 0 : i32
    %c0_i32_1 = arith.constant 0 : i32
    return %c0_i32, %c0_i32_0 : i32, i32
  }
  func.func @transform_7(%arg0: i32) -> (i32, i32) {
    %c0_i32 = arith.constant 0 : i32
    %c0_i32_0 = arith.constant 0 : i32
    %c0_i32_1 = arith.constant 0 : i32
    return %c0_i32, %c0_i32_0 : i32, i32
  }
}

</mosaic_0001>

<llo_original>
// kernel: _forward.1
$region0: #{_forward.1}
  #allocation0 [shape = 'u32[]', space=smem, size = 0x4, offset = 0x4, fixed_abs, tag = 'smem constant byte address 0x4 - core index']
  #allocation1 [shape = 'u32[144,128]{1,0:T(1,128)}', space=vmem, size = 0x12000, scoped, tag = 'internal scratch']
  %s0 = inlined_call_operand.vmem [shape: f32[32,64], index: 0, kind: input, shape index: {}]
  %s1 = inlined_call_operand.vmem [shape: bf16[1,128], index: 1, kind: input, shape index: {}]
  %s2 = inlined_call_operand.vmem [shape: bf16[64,128], index: 2, kind: input, shape index: {}]
  %s3 = inlined_call_operand.vmem [shape: bf16[128,128], index: 3, kind: input, shape index: {}]
  %s4 = inlined_call_operand.vmem [shape: bf16[128,32], index: 4, kind: input, shape index: {}]
  %s5 = inlined_call_operand.vmem [shape: bf16[128,32], index: 5, kind: input, shape index: {}]
  %s6 = inlined_call_operand.hbm [shape: f32[2,32], index: 6, kind: output, shape index: {0}]
  %s7 = inlined_call_operand.hbm [shape: f32[32,32], index: 7, kind: output, shape index: {1}]
  %8 = xla_tuple %s6, %s7
  %s9 = sld [smem:[#allocation0]]
  $region42: #{_forward.1} parent=0
    _
  %s11 = ssub.s32 1, %s9
  %s12 = scalar_select 0, %s11, %s9
  $region1: #{_forward.1} parent=0
    #allocation2 [shape = 'u8[1024]{0}', space=vmem, size = 0x400, scoped, tag = 'output window, operand 0, single buffered']
    #allocation3 [shape = 's32[1]{0}', space=sflag, size = 0x4, scoped, tag = 'scoped memory for _forward.1']
    #allocation4 [shape = 'u8[16384]{0}', space=vmem, size = 0x4000, scoped, tag = 'output window, operand 1, single buffered']
    #allocation5 [shape = 's32[1]{0}', space=sflag, size = 0x4, scoped, tag = 'scoped memory for _forward.1']
    %13 = vsyncpa [#allocation3], 0
    %14 = vsyncpa [#allocation5], 0
    // Predicated region
    $region2: #{_forward.1} parent=1 // pred_check
      _
    $region3: #{_forward.1} parent=1 // pred_check_branch
      %16 = sbr.rel (0) target = $region5
    $region4: #{_forward.1} parent=1 // pred_region
      _
    $region5: #{_forward.1} parent=1 // pred_fallthru
      _
    // Predicated region
    $region6: #{_forward.1} parent=1 // pred_check
      _
    $region7: #{_forward.1} parent=1 // pred_check_branch
      %18 = sbr.rel (0) target = $region9
    $region8: #{_forward.1} parent=1 // pred_region
      _
    $region9: #{_forward.1} parent=1 // pred_fallthru
      _
    // Predicated region
    $region10: #{_forward.1} parent=1 // pred_check
      _
    $region11: #{_forward.1} parent=1 // pred_check_branch
      %20 = sbr.rel (0) target = $region13
    $region12: #{_forward.1} parent=1 // pred_region
      _
    $region13: #{_forward.1} parent=1 // pred_fallthru
      _
    // Predicated region
    $region14: #{_forward.1} parent=1 // pred_check
      _
    $region15: #{_forward.1} parent=1 // pred_check_branch
      %22 = sbr.rel (0) target = $region17
    $region16: #{_forward.1} parent=1 // pred_region
      _
    $region17: #{_forward.1} parent=1 // pred_fallthru
      _
    // Predicated region
    $region18: #{_forward.1} parent=1 // pred_check
      _
    $region19: #{_forward.1} parent=1 // pred_check_branch
      %24 = sbr.rel (0) target = $region21
    $region20: #{_forward.1} parent=1 // pred_region
      _
    $region21: #{_forward.1} parent=1 // pred_fallthru
      _
    // Predicated region
    $region22: #{_forward.1} parent=1 // pred_check
      _
    $region23: #{_forward.1} parent=1 // pred_check_branch
      %26 = sbr.rel (0) target = $region25
    $region24: #{_forward.1} parent=1 // pred_region
      _
    $region25: #{_forward.1} parent=1 // pred_fallthru
      _
    %v28 = vld [vmem:[%s0] sm:$0xff]
    %v29 = vld [vmem:[%s0 + $0x8] sm:$0xff]
    %v30 = vld [vmem:[%s0 + $0x10] sm:$0xff]
    %v31 = vld [vmem:[%s0 + $0x18] sm:$0xff]
    %v32 = vpack.c.bf16 %v29, %v28
    %v33 = vpack.c.bf16 %v31, %v30
    %v34 = vld [vmem:[%s2] sm:$0xf]
    %v35 = vld [vmem:[%s2 + $0x4] sm:$0xf]
    %v36 = vld [vmem:[%s2 + $0x8] sm:$0xf]
    %v37 = vld [vmem:[%s2 + $0xc] sm:$0xf]
    %v38 = vld [vmem:[%s2 + $0x10] sm:$0xf]
    %v39 = vld [vmem:[%s2 + $0x14] sm:$0xf]
    %v40 = vld [vmem:[%s2 + $0x18] sm:$0xf]
    %v41 = vld [vmem:[%s2 + $0x1c] sm:$0xf]
    %v50 = vunpack.c.l.b16 %v34
    %v51 = vunpack.c.l.b16 %v35
    %v52 = vunpack.c.l.b16 %v36
    %v53 = vunpack.c.l.b16 %v37
    %v54 = vunpack.c.l.b16 %v38
    %v55 = vunpack.c.l.b16 %v39
    %v56 = vunpack.c.l.b16 %v40
    %v57 = vunpack.c.l.b16 %v41
    %v58 = vpack.c.b16 %v51, %v50
    %v59 = vpack.c.b16 %v53, %v52
    %v60 = vpack.c.b16 %v55, %v54
    %v61 = vpack.c.b16 %v57, %v56
    %vm66 = vcmask 523264
    %v68 = vsel %vm66, %v32, 0
    %v71 = vsel %vm66, %v33, 0
    %73 = vmatprep.subr.bf16.mxu0 0
    %74 = vmatpush1.bf16.msra.mxu0 0
    %75 = vmatprep.subr.bf16.mxu0 0
    %76 = vmatpush1.bf16.msra.mxu0 0
    %77 = vmatprep.subr.bf16.mxu0 0
    %78 = vmatpush1.bf16.msra.mxu0 0
    %79 = vmatprep.subr.bf16.mxu0 0
    %80 = vmatpush1.bf16.msra.mxu0 0
    %81 = vmatprep.subr.bf16.mxu0 0
    %82 = vmatpush1.bf16.msra.mxu0 %v61
    %83 = vmatprep.subr.bf16.mxu0 0
    %84 = vmatpush1.bf16.msra.mxu0 %v60
    %85 = vmatprep.subr.bf16.mxu0 0
    %86 = vmatpush1.bf16.msra.mxu0 %v59
    %87 = vmatprep.subr.bf16.mxu0 0
    %88 = vmatpush1.bf16.msra.mxu0 %v58
    %89 = vmatprep.subr.bf16.mxu0 0
    %90 = vmatpush2.bf16.msra.mxu0 0
    %91 = vmatprep.subr.bf16.mxu0 0
    %92 = vmatpush2.bf16.msra.mxu0 0
    %93 = vmatprep.subr.bf16.mxu0 0
    %94 = vmatpush2.bf16.msra.mxu0 0
    %95 = vmatprep.subr.bf16.mxu0 0
    %96 = vmatpush2.bf16.msra.mxu0 0
    %97 = vmatprep.subr.bf16.mxu0 0
    %98 = vmatpush2.bf16.msra.mxu0 0
    %99 = vmatprep.subr.bf16.mxu0 0
    %100 = vmatpush2.bf16.msra.mxu0 0
    %101 = vmatprep.subr.bf16.mxu0 0
    %102 = vmatpush2.bf16.msra.mxu0 0
    %103 = vmatprep.subr.bf16.mxu0 0
    %104 = vmatpush2.bf16.msra.mxu0 0
    %105 = vmatprep.mubr.bf16.mxu0 0
    %106 = vmatmul.mubr.bf16.gmra.mxu0 %v68
    %v107 = vpop.f32.mrf.mxu0
    %v108 = vadd.f32 0.0, %v107
    %v109 = vpop.f32.mrf.mxu0
    %v110 = vpop.f32.mrf.mxu0
    %v111 = vadd.f32 0.0, %v110
    %v112 = vpop.f32.mrf.mxu0
    %113 = vmatprep.mubr.bf16.mxu0 0
    %114 = vmatmul.mubr.bf16.gmra.mxu0 %v71
    %v115 = vpop.f32.mrf.mxu0
    %v116 = vadd.f32 0.0, %v115
    %v117 = vpop.f32.mrf.mxu0
    %v118 = vpop.f32.mrf.mxu0
    %v119 = vadd.f32 0.0, %v118
    %v120 = vpop.f32.mrf.mxu0
    %121 = vdwg.mxu0
    %v122 = vpack.c.bf16 %v111, %v108
    %v123 = vpack.c.bf16 %v119, %v116
    %v124 = vld [vmem:[%s1] sm:$0x1]
    %v125 = vld [vmem:[%s3] sm:$0xf]
    %v126 = vld [vmem:[%s3 + $0x4] sm:$0xf]
    %v127 = vld [vmem:[%s3 + $0x8] sm:$0xf]
    %v128 = vld [vmem:[%s3 + $0xc] sm:$0xf]
    %v129 = vld [vmem:[%s3 + $0x10] sm:$0xf]
    %v130 = vld [vmem:[%s3 + $0x14] sm:$0xf]
    %v131 = vld [vmem:[%s3 + $0x18] sm:$0xf]
    %v132 = vld [vmem:[%s3 + $0x1c] sm:$0xf]
    %v133 = vld [vmem:[%s3 + $0x20] sm:$0xf]
    %v134 = vld [vmem:[%s3 + $0x24] sm:$0xf]
    %v135 = vld [vmem:[%s3 + $0x28] sm:$0xf]
    %v136 = vld [vmem:[%s3 + $0x2c] sm:$0xf]
    %v137 = vld [vmem:[%s3 + $0x30] sm:$0xf]
    %v138 = vld [vmem:[%s3 + $0x34] sm:$0xf]
    %v139 = vld [vmem:[%s3 + $0x38] sm:$0xf]
    %v140 = vld [vmem:[%s3 + $0x3c] sm:$0xf]
    %v157 = vunpack.c.l.b16 %v125
    %v158 = vunpack.c.l.b16 %v126
    %v159 = vunpack.c.l.b16 %v127
    %v160 = vunpack.c.l.b16 %v128
    %v161 = vunpack.c.l.b16 %v129
    %v162 = vunpack.c.l.b16 %v130
    %v163 = vunpack.c.l.b16 %v131
    %v164 = vunpack.c.l.b16 %v132
    %v165 = vunpack.c.l.b16 %v133
    %v166 = vunpack.c.l.b16 %v134
    %v167 = vunpack.c.l.b16 %v135
    %v168 = vunpack.c.l.b16 %v136
    %v169 = vunpack.c.l.b16 %v137
    %v170 = vunpack.c.l.b16 %v138
    %v171 = vunpack.c.l.b16 %v139
    %v172 = vunpack.c.l.b16 %v140
    %v173 = vpack.c.b16 %v158, %v157
    %v174 = vpack.c.b16 %v160, %v159
    %v175 = vpack.c.b16 %v162, %v161
    %v176 = vpack.c.b16 %v164, %v163
    %v177 = vpack.c.b16 %v166, %v165
    %v178 = vpack.c.b16 %v168, %v167
    %v179 = vpack.c.b16 %v170, %v169
    %v180 = vpack.c.b16 %v172, %v171
    %189 = vmatprep.subr.bf16.mxu0 0
    %190 = vmatpush1.bf16.msra.mxu0 %v180
    %191 = vmatprep.subr.bf16.mxu0 0
    %192 = vmatpush1.bf16.msra.mxu0 %v179
    %193 = vmatprep.subr.bf16.mxu0 0
    %194 = vmatpush1.bf16.msra.mxu0 %v178
    %195 = vmatprep.subr.bf16.mxu0 0
    %196 = vmatpush1.bf16.msra.mxu0 %v177
    %197 = vmatprep.subr.bf16.mxu0 0
    %198 = vmatpush1.bf16.msra.mxu0 %v176
    %199 = vmatprep.subr.bf16.mxu0 0
    %200 = vmatpush1.bf16.msra.mxu0 %v175
    %201 = vmatprep.subr.bf16.mxu0 0
    %202 = vmatpush1.bf16.msra.mxu0 %v174
    %203 = vmatprep.subr.bf16.mxu0 0
    %204 = vmatpush1.bf16.msra.mxu0 %v173
    %205 = vmatprep.subr.bf16.mxu0 0
    %206 = vmatpush2.bf16.msra.mxu0 0
    %207 = vmatprep.subr.bf16.mxu0 0
    %208 = vmatpush2.bf16.msra.mxu0 0
    %209 = vmatprep.subr.bf16.mxu0 0
    %210 = vmatpush2.bf16.msra.mxu0 0
    %211 = vmatprep.subr.bf16.mxu0 0
    %212 = vmatpush2.bf16.msra.mxu0 0
    %213 = vmatprep.subr.bf16.mxu0 0
    %214 = vmatpush2.bf16.msra.mxu0 0
    %215 = vmatprep.subr.bf16.mxu0 0
    %216 = vmatpush2.bf16.msra.mxu0 0
    %217 = vmatprep.subr.bf16.mxu0 0
    %218 = vmatpush2.bf16.msra.mxu0 0
    %219 = vmatprep.subr.bf16.mxu0 0
    %220 = vmatpush2.bf16.msra.mxu0 0
    %221 = vmatprep.mubr.bf16.mxu0 0
    %222 = vmatmul.mubr.bf16.gmra.mxu0 %v122
    %v223 = vpop.f32.mrf.mxu0
    %v224 = vadd.f32 0.0, %v223
    %v225 = vpop.f32.mrf.mxu0
    %v226 = vpop.f32.mrf.mxu0
    %v227 = vadd.f32 0.0, %v226
    %v228 = vpop.f32.mrf.mxu0
    %229 = vmatprep.mubr.bf16.mxu0 0
    %230 = vmatmul.mubr.bf16.gmra.mxu0 %v123
    %v231 = vpop.f32.mrf.mxu0
    %v232 = vadd.f32 0.0, %v231
    %v233 = vpop.f32.mrf.mxu0
    %v234 = vpop.f32.mrf.mxu0
    %v235 = vadd.f32 0.0, %v234
    %v236 = vpop.f32.mrf.mxu0
    %237 = vmatprep.mubr.bf16.mxu0 0
    %238 = vmatmul.mubr.bf16.gmra.mxu0 %v124
    %v239 = vpop.f32.mrf.mxu0
    %v240 = vadd.f32 0.0, %v239
    %v241 = vpop.f32.mrf.mxu0
    %v242 = vpop.f32.mrf.mxu0
    %v243 = vpop.f32.mrf.mxu0
    %244 = vdwg.mxu0
    %v245 = vpack.c.bf16 %v227, %v224
    %v246 = vpack.c.bf16 %v235, %v232
    %v247 = vpack.c.bf16 %v240, %v240
    %v248 = vld [vmem:[%s4] sm:$0xf]
    %v249 = vld [vmem:[%s4 + $0x4] sm:$0xf]
    %v250 = vld [vmem:[%s4 + $0x8] sm:$0xf]
    %v251 = vld [vmem:[%s4 + $0xc] sm:$0xf]
    %v252 = vld [vmem:[%s4 + $0x10] sm:$0xf]
    %v253 = vld [vmem:[%s4 + $0x14] sm:$0xf]
    %v254 = vld [vmem:[%s4 + $0x18] sm:$0xf]
    %v255 = vld [vmem:[%s4 + $0x1c] sm:$0xf]
    %v256 = vld [vmem:[%s4 + $0x20] sm:$0xf]
    %v257 = vld [vmem:[%s4 + $0x24] sm:$0xf]
    %v258 = vld [vmem:[%s4 + $0x28] sm:$0xf]
    %v259 = vld [vmem:[%s4 + $0x2c] sm:$0xf]
    %v260 = vld [vmem:[%s4 + $0x30] sm:$0xf]
    %v261 = vld [vmem:[%s4 + $0x34] sm:$0xf]
    %v262 = vld [vmem:[%s4 + $0x38] sm:$0xf]
    %v263 = vld [vmem:[%s4 + $0x3c] sm:$0xf]
    %v280 = vunpack.c.l.b16 %v248
    %v281 = vunpack.c.l.b16 %v249
    %v282 = vunpack.c.l.b16 %v250
    %v283 = vunpack.c.l.b16 %v251
    %v284 = vunpack.c.l.b16 %v252
    %v285 = vunpack.c.l.b16 %v253
    %v286 = vunpack.c.l.b16 %v254
    %v287 = vunpack.c.l.b16 %v255
    %v288 = vunpack.c.l.b16 %v256
    %v289 = vunpack.c.l.b16 %v257
    %v290 = vunpack.c.l.b16 %v258
    %v291 = vunpack.c.l.b16 %v259
    %v292 = vunpack.c.l.b16 %v260
    %v293 = vunpack.c.l.b16 %v261
    %v294 = vunpack.c.l.b16 %v262
    %v295 = vunpack.c.l.b16 %v263
    %v296 = vpack.c.b16 %v281, %v280
    %v297 = vpack.c.b16 %v283, %v282
    %v298 = vpack.c.b16 %v285, %v284
    %v299 = vpack.c.b16 %v287, %v286
    %v300 = vpack.c.b16 %v289, %v288
    %v301 = vpack.c.b16 %v291, %v290
    %v302 = vpack.c.b16 %v293, %v292
    %v303 = vpack.c.b16 %v295, %v294
    %312 = vmatprep.subr.bf16.mxu0 0
    %313 = vmatpush1.bf16.msra.mxu0 %v303
    %314 = vmatprep.subr.bf16.mxu0 0
    %315 = vmatpush1.bf16.msra.mxu0 %v302
    %316 = vmatprep.subr.bf16.mxu0 0
    %317 = vmatpush1.bf16.msra.mxu0 %v301
    %318 = vmatprep.subr.bf16.mxu0 0
    %319 = vmatpush1.bf16.msra.mxu0 %v300
    %320 = vmatprep.subr.bf16.mxu0 0
    %321 = vmatpush1.bf16.msra.mxu0 %v299
    %322 = vmatprep.subr.bf16.mxu0 0
    %323 = vmatpush1.bf16.msra.mxu0 %v298
    %324 = vmatprep.subr.bf16.mxu0 0
    %325 = vmatpush1.bf16.msra.mxu0 %v297
    %326 = vmatprep.subr.bf16.mxu0 0
    %327 = vmatpush1.bf16.msra.mxu0 %v296
    %328 = vmatprep.subr.bf16.mxu0 0
    %329 = vmatpush2.bf16.msra.mxu0 0
    %330 = vmatprep.subr.bf16.mxu0 0
    %331 = vmatpush2.bf16.msra.mxu0 0
    %332 = vmatprep.subr.bf16.mxu0 0
    %333 = vmatpush2.bf16.msra.mxu0 0
    %334 = vmatprep.subr.bf16.mxu0 0
    %335 = vmatpush2.bf16.msra.mxu0 0
    %336 = vmatprep.subr.bf16.mxu0 0
    %337 = vmatpush2.bf16.msra.mxu0 0
    %338 = vmatprep.subr.bf16.mxu0 0
    %339 = vmatpush2.bf16.msra.mxu0 0
    %340 = vmatprep.subr.bf16.mxu0 0
    %341 = vmatpush2.bf16.msra.mxu0 0
    %342 = vmatprep.subr.bf16.mxu0 0
    %343 = vmatpush2.bf16.msra.mxu0 0
    %344 = vmatprep.mubr.bf16.mxu0 0
    %345 = vmatmul.mubr.bf16.gmra.mxu0 %v247
    %v346 = vpop.f32.mrf.mxu0
    %v347 = vadd.f32 0.0, %v346
    %v348 = vpop.f32.mrf.mxu0
    %v349 = vpop.f32.mrf.mxu0
    %v350 = vpop.f32.mrf.mxu0
    %351 = vdwg.mxu0
    %v352 = vld [vmem:[%s5] sm:$0xf]
    %v353 = vld [vmem:[%s5 + $0x4] sm:$0xf]
    %v354 = vld [vmem:[%s5 + $0x8] sm:$0xf]
    %v355 = vld [vmem:[%s5 + $0xc] sm:$0xf]
    %v356 = vld [vmem:[%s5 + $0x10] sm:$0xf]
    %v357 = vld [vmem:[%s5 + $0x14] sm:$0xf]
    %v358 = vld [vmem:[%s5 + $0x18] sm:$0xf]
    %v359 = vld [vmem:[%s5 + $0x1c] sm:$0xf]
    %v360 = vld [vmem:[%s5 + $0x20] sm:$0xf]
    %v361 = vld [vmem:[%s5 + $0x24] sm:$0xf]
    %v362 = vld [vmem:[%s5 + $0x28] sm:$0xf]
    %v363 = vld [vmem:[%s5 + $0x2c] sm:$0xf]
    %v364 = vld [vmem:[%s5 + $0x30] sm:$0xf]
    %v365 = vld [vmem:[%s5 + $0x34] sm:$0xf]
    %v366 = vld [vmem:[%s5 + $0x38] sm:$0xf]
    %v367 = vld [vmem:[%s5 + $0x3c] sm:$0xf]
    %v384 = vunpack.c.l.b16 %v352
    %v385 = vunpack.c.l.b16 %v353
    %v386 = vunpack.c.l.b16 %v354
    %v387 = vunpack.c.l.b16 %v355
    %v388 = vunpack.c.l.b16 %v356
    %v389 = vunpack.c.l.b16 %v357
    %v390 = vunpack.c.l.b16 %v358
    %v391 = vunpack.c.l.b16 %v359
    %v392 = vunpack.c.l.b16 %v360
    %v393 = vunpack.c.l.b16 %v361
    %v394 = vunpack.c.l.b16 %v362
    %v395 = vunpack.c.l.b16 %v363
    %v396 = vunpack.c.l.b16 %v364
    %v397 = vunpack.c.l.b16 %v365
    %v398 = vunpack.c.l.b16 %v366
    %v399 = vunpack.c.l.b16 %v367
    %v400 = vpack.c.b16 %v385, %v384
    %v401 = vpack.c.b16 %v387, %v386
    %v402 = vpack.c.b16 %v389, %v388
    %v403 = vpack.c.b16 %v391, %v390
    %v404 = vpack.c.b16 %v393, %v392
    %v405 = vpack.c.b16 %v395, %v394
    %v406 = vpack.c.b16 %v397, %v396
    %v407 = vpack.c.b16 %v399, %v398
    %416 = vmatprep.subr.bf16.mxu0 0
    %417 = vmatpush1.bf16.msra.mxu0 %v407
    %418 = vmatprep.subr.bf16.mxu0 0
    %419 = vmatpush1.bf16.msra.mxu0 %v406
    %420 = vmatprep.subr.bf16.mxu0 0
    %421 = vmatpush1.bf16.msra.mxu0 %v405
    %422 = vmatprep.subr.bf16.mxu0 0
    %423 = vmatpush1.bf16.msra.mxu0 %v404
    %424 = vmatprep.subr.bf16.mxu0 0
    %425 = vmatpush1.bf16.msra.mxu0 %v403
    %426 = vmatprep.subr.bf16.mxu0 0
    %427 = vmatpush1.bf16.msra.mxu0 %v402
    %428 = vmatprep.subr.bf16.mxu0 0
    %429 = vmatpush1.bf16.msra.mxu0 %v401
    %430 = vmatprep.subr.bf16.mxu0 0
    %431 = vmatpush1.bf16.msra.mxu0 %v400
    %432 = vmatprep.subr.bf16.mxu0 0
    %433 = vmatpush2.bf16.msra.mxu0 0
    %434 = vmatprep.subr.bf16.mxu0 0
    %435 = vmatpush2.bf16.msra.mxu0 0
    %436 = vmatprep.subr.bf16.mxu0 0
    %437 = vmatpush2.bf16.msra.mxu0 0
    %438 = vmatprep.subr.bf16.mxu0 0
    %439 = vmatpush2.bf16.msra.mxu0 0
    %440 = vmatprep.subr.bf16.mxu0 0
    %441 = vmatpush2.bf16.msra.mxu0 0
    %442 = vmatprep.subr.bf16.mxu0 0
    %443 = vmatpush2.bf16.msra.mxu0 0
    %444 = vmatprep.subr.bf16.mxu0 0
    %445 = vmatpush2.bf16.msra.mxu0 0
    %446 = vmatprep.subr.bf16.mxu0 0
    %447 = vmatpush2.bf16.msra.mxu0 0
    %448 = vmatprep.mubr.bf16.mxu0 0
    %449 = vmatmul.mubr.bf16.gmra.mxu0 %v245
    %v450 = vpop.f32.mrf.mxu0
    %v451 = vadd.f32 0.0, %v450
    %v452 = vpop.f32.mrf.mxu0
    %v453 = vpop.f32.mrf.mxu0
    %v454 = vadd.f32 0.0, %v453
    %v455 = vpop.f32.mrf.mxu0
    %456 = vmatprep.mubr.bf16.mxu0 0
    %457 = vmatmul.mubr.bf16.gmra.mxu0 %v246
    %v458 = vpop.f32.mrf.mxu0
    %v459 = vadd.f32 0.0, %v458
    %v460 = vpop.f32.mrf.mxu0
    %v461 = vpop.f32.mrf.mxu0
    %v462 = vadd.f32 0.0, %v461
    %v463 = vpop.f32.mrf.mxu0
    %464 = vdwg.mxu0
    %v465 = vlaneseq
    %v466 = vshrl.u32 %v465, 7
    %v467 = vsub.s32 0, %v466
    %v468 = vrot.slane %v347, %v467
    %vm469 = vcmask 254976
    %470 = vst.msk [vmem:[#allocation2] sm:$0x3] %vm469, %v468
    %vm471 = vcmask 261120
    %472 = vst.msk [vmem:[#allocation4] sm:$0xff] %vm471, %v451
    %473 = vst.msk [vmem:[#allocation4 + $0x8] sm:$0xff] %vm471, %v454
    %474 = vst.msk [vmem:[#allocation4 + $0x10] sm:$0xff] %vm471, %v459
    %475 = vst.msk [vmem:[#allocation4 + $0x18] sm:$0xff] %vm471, %v462
    // Predicated region
    $region26: #{_forward.1} parent=1 // pred_check
      _
    $region27: #{_forward.1} parent=1 // pred_check_branch
      %477 = sbr.rel (0) target = $region29
    $region28: #{_forward.1} parent=1 // pred_region
      %s479 = ssub.s32 32, 32
      %480 = vsyncadd [#allocation3], %s479
      %s482 = sshll.u32 [#allocation2], 4
      %s483 = int_to_ptr.vmem [resolvable:$true] %s482
      %485 = dma.vmem_to_hbm [thread:$0]  %s483, 32, %s6, [#allocation3]
    $region29: #{_forward.1} parent=1 // pred_fallthru
      _
    // Predicated region
    $region30: #{_forward.1} parent=1 // pred_check
      _
    $region31: #{_forward.1} parent=1 // pred_check_branch
      %487 = sbr.rel (0) target = $region33
    $region32: #{_forward.1} parent=1 // pred_region
      %s489 = ssub.s32 512, 512
      %490 = vsyncadd [#allocation5], %s489
      %s491 = sshll.u32 [#allocation4], 4
      %s492 = int_to_ptr.vmem [resolvable:$true] %s491
      %497 = dma.vmem_to_hbm [thread:$0]  %s492, 512, %s7, [#allocation5], 128, 128, 8
    $region33: #{_forward.1} parent=1 // pred_fallthru
      _
    // Predicated region
    $region34: #{_forward.1} parent=1 // pred_check
      _
    $region35: #{_forward.1} parent=1 // pred_check_branch
      %499 = sbr.rel (0) target = $region37
    $region36: #{_forward.1} parent=1 // pred_region
      %500 = dma.done [#allocation3], 32
    $region37: #{_forward.1} parent=1 // pred_fallthru
      _
    // Predicated region
    $region38: #{_forward.1} parent=1 // pred_check
      _
    $region39: #{_forward.1} parent=1 // pred_check_branch
      %502 = sbr.rel (0) target = $region41
    $region40: #{_forward.1} parent=1 // pred_region
      %503 = dma.done [#allocation5], 512
    $region41: #{_forward.1} parent=1 // pred_fallthru
      _
    %504 = vsyncpa [#allocation3], 1
    %505 = vsyncpa [#allocation5], 1

</llo_original>
